<compile_context>
chip_gen: v6e
topology: v6e:2x2x1
jax: 0.10.0
libtpu: 0.0.40
codegen_flags: <defaults>
</compile_context>

<pallas_src>
import functools

import jax
import jax.numpy as jnp
from jax import lax
from jax.experimental import pallas as pl
from jax.experimental.pallas import tpu as pltpu


# ---------------------------------------------------------------------------
# Pallas kernel: embedding gather + LSTM recurrence + FC + sigmoid.
# Single invocation, everything resident in VMEM (no grid) - shapes are tiny.
# ---------------------------------------------------------------------------
def lstm_fc_kernel(tok_ref,    # (T*BP, 1) int32  time-major padded token ids
                   emb_ref,    # (V, E)    bf16   embedding table
                   wih_ref,    # (E, 4H)   bf16   input->gates weight (pre-T)
                   whh_ref,    # (H, 4H)   bf16   hidden->gates weight (pre-T)
                   b_ref,      # (1, 4H)   f32    combined bias (b_ih + b_hh)
                   wfc_ref,    # (H, O)    bf16   fc weight (pre-T)
                   bfc_ref,    # (1, O)    f32    fc bias
                   out_ref,    # (BP, T*O) f32    sigmoid(fc(h_t)), lane-dense
                   *, seq_len, bpad):
    T, BP = seq_len, bpad
    V = emb_ref.shape[0]
    H = whh_ref.shape[0]
    O = wfc_ref.shape[1]

    # (1) In-kernel embedding gather as a one-hot MXU matmul.
    #     one-hot values are exactly 0/1 in bf16; accumulation is f32, so the
    #     gathered rows equal the bf16 table rows exactly.
    tok = tok_ref[...]                                            # (T*BP, 1)
    lane = lax.broadcasted_iota(jnp.int32, (T * BP, V), 1)
    onehot = (lane == tok).astype(jnp.bfloat16)                   # (T*BP, V)
    emb = jnp.dot(onehot, emb_ref[...],
                  preferred_element_type=jnp.float32)             # (T*BP, E)

    # (2) Input projection for ALL timesteps in one MXU matmul + one bias add.
    x_gates = (jnp.dot(emb.astype(jnp.bfloat16), wih_ref[...],
                       preferred_element_type=jnp.float32)
               + b_ref[...])                                      # (T*BP, 4H)

    w_hh = whh_ref[...]                                           # (H, 4H) bf16

    h = jnp.zeros((BP, H), jnp.float32)
    c = jnp.zeros((BP, H), jnp.float32)
    h_b = h.astype(jnp.bfloat16)                                  # MXU operand
    hs = []

    # (3) Fully-unrolled recurrence: only the tiny bf16 (BP,H)@(H,4H) matmul
    #     sits on the serial chain; per-step x_gates slice is an aligned
    #     (8, 128) whole-vreg read; state never leaves vregs.
    for t in range(T):
        gates = (x_gates[t * BP:(t + 1) * BP, :]
                 + jnp.dot(h_b, w_hh,
                           preferred_element_type=jnp.float32))   # (BP, 4H)

        # Full-width nonlinearities on the 4H = 128-lane tile, then slice.
        sig = jax.nn.sigmoid(gates)
        th = jnp.tanh(gates)
        i_g = sig[:, 0 * H:1 * H]       # input gate
        f_g = sig[:, 1 * H:2 * H]       # forget gate
        g_g = th[:, 2 * H:3 * H]        # cell candidate
        o_g = sig[:, 3 * H:4 * H]       # output gate

        c = f_g * c + i_g * g_g
        h = o_g * jnp.tanh(c)
        h_b = h.astype(jnp.bfloat16)
        hs.append(h)                                              # stays in vregs

    # (4) One FC matmul + sigmoid over all timesteps, then assemble a
    #     lane-dense (BP, T*O) tile and store it with a single unmasked vst.
    h_all = jnp.concatenate(hs, axis=0).astype(jnp.bfloat16)      # (T*BP, H)
    y = jax.nn.sigmoid(
        jnp.dot(h_all, wfc_ref[...], preferred_element_type=jnp.float32)
        + bfc_ref[...])                                           # (T*BP, O) f32
    y_rows = [y[t * BP:(t + 1) * BP, :] for t in range(T)]        # T x (BP, O)
    out_ref[...] = jnp.concatenate(y_rows, axis=1).astype(out_ref.dtype)


# ---------------------------------------------------------------------------
# One-time parameter preprocessing (hoisted out of the forward).
# ---------------------------------------------------------------------------
def preprocess_params(params):
    H = params["w_hh"].shape[1]
    O = params["w_fc"].shape[0]
    return {
        "emb": params["embedding"].astype(jnp.bfloat16),                # (V, E)
        "wih_t": jnp.transpose(params["w_ih"]).astype(jnp.bfloat16),    # (E, 4H)
        "whh_t": jnp.transpose(params["w_hh"]).astype(jnp.bfloat16),    # (H, 4H)
        "bias": (params["b_ih"] + params["b_hh"]).reshape(1, 4 * H)
                .astype(jnp.float32),                                   # (1, 4H)
        "wfc_t": jnp.transpose(params["w_fc"]).astype(jnp.bfloat16),    # (H, O)
        "bfc": params["b_fc"].reshape(1, O).astype(jnp.float32),        # (1, O)
    }


# ---------------------------------------------------------------------------
# Wrapper: tiny token-layout prep (256 B of int32 glue) + pallas_call + slice.
# ---------------------------------------------------------------------------
def character_model_forward(tokens, kp):
    """tokens: int32 (B, T). kp: preprocess_params output. Returns (B, T, O)."""
    B, T = tokens.shape
    H = kp["whh_t"].shape[0]
    O = kp["wfc_t"].shape[1]
    BPAD = 8
    assert B <= BPAD

    # Time-major token ids, batch padded to 8 sublanes (row index = t*8 + b).
    tok_tm = jnp.zeros((T, BPAD), jnp.int32).at[:, :B].set(jnp.transpose(tokens))
    tok_tm = tok_tm.reshape(T * BPAD, 1)

    vmem = pl.BlockSpec(memory_space=pltpu.MemorySpace.VMEM)
    kernel = functools.partial(lstm_fc_kernel, seq_len=T, bpad=BPAD)

    out_full = pl.pallas_call(
        kernel,
        out_shape=jax.ShapeDtypeStruct((BPAD, T * O), jnp.float32),
        in_specs=[vmem] * 7,
        out_specs=vmem,
    )(tok_tm, kp["emb"], kp["wih_t"], kp["whh_t"], kp["bias"],
      kp["wfc_t"], kp["bfc"])

    # (BPAD, T*O) lane-dense, batch-major -> (B, T, O): slice + reshape only.
    return out_full[:B].reshape(B, T, O)


# ---------------------------------------------------------------------------
# Pure-JAX f32 reference (same math, plain XLA) for a correctness cross-check.
# ---------------------------------------------------------------------------
def reference_forward(tokens, params):
    emb = jnp.take(params["embedding"], tokens, axis=0)  # (B, T, E)
    B, T, _ = emb.shape
    w_ih, w_hh = params["w_ih"], params["w_hh"]
    H = w_hh.shape[1]
    b = params["b_ih"] + params["b_hh"]

    def step(carry, x_t):
        h, c = carry
        gates = x_t @ w_ih.T + h @ w_hh.T + b
        i = jax.nn.sigmoid(gates[:, 0 * H:1 * H])
        f = jax.nn.sigmoid(gates[:, 1 * H:2 * H])
        g = jnp.tanh(gates[:, 2 * H:3 * H])
        o = jax.nn.sigmoid(gates[:, 3 * H:4 * H])
        c_new = f * c + i * g
        h_new = o * jnp.tanh(c_new)
        return (h_new, c_new), h_new

    xs = jnp.transpose(emb, (1, 0, 2))                   # (T, B, E)
    h0 = jnp.zeros((B, H), jnp.float32)
    c0 = jnp.zeros((B, H), jnp.float32)
    _, hs = lax.scan(step, (h0, c0), xs)                 # (T, B, H)
    y = jax.nn.sigmoid(jnp.einsum("tbh,oh->tbo", hs, params["w_fc"])
                       + params["b_fc"])                 # (T, B, O)
    return jnp.transpose(y, (1, 0, 2))                   # (B, T, O)


# ---------------------------------------------------------------------------
# Deterministic parameter initialization (matches nn.Module shapes).
# ---------------------------------------------------------------------------
def init_params(key, vocab_size, embed_dim, hidden_dim, output_dim):
    keys = jax.random.split(key, 7)
    scale = 1.0 / jnp.sqrt(hidden_dim)
    return {
        "embedding": jax.random.normal(keys[0], (vocab_size, embed_dim),
                                       jnp.float32) * 0.1,
        "w_ih": jax.random.uniform(keys[1], (4 * hidden_dim, embed_dim),
                                   jnp.float32, -scale, scale),
        "w_hh": jax.random.uniform(keys[2], (4 * hidden_dim, hidden_dim),
                                   jnp.float32, -scale, scale),
        "b_ih": jax.random.uniform(keys[3], (4 * hidden_dim,),
                                   jnp.float32, -scale, scale),
        "b_hh": jax.random.uniform(keys[4], (4 * hidden_dim,),
                                   jnp.float32, -scale, scale),
        "w_fc": jax.random.uniform(keys[5], (output_dim, hidden_dim),
                                   jnp.float32, -scale, scale),
        "b_fc": jax.random.uniform(keys[6], (output_dim,),
                                   jnp.float32, -scale, scale),
    }


if __name__ == "__main__":
    vocab_size = 128
    embed_dim = 64
    hidden_dim = 32
    output_dim = 16
    batch, seq = 2, 8

    key = jax.random.PRNGKey(0)
    k_tok, k_par = jax.random.split(key)

    tokens = jax.random.randint(k_tok, (batch, seq), 0, vocab_size, jnp.int32)
    params = init_params(k_par, vocab_size, embed_dim, hidden_dim, output_dim)
    kparams = preprocess_params(params)   # one-time, outside the forward

    out = character_model_forward(tokens, kparams)
    out = jax.block_until_ready(out)

    assert out.shape == (batch, seq, output_dim)
    assert bool(jnp.all(jnp.isfinite(out)))
    assert bool(jnp.all((out >= 0.0) & (out <= 1.0)))

    # Cross-check against the plain-JAX f32 reference. Tolerance re-derived for
    # bf16 MXU operands compounding through the 8-step recurrence.
    ref = jax.block_until_ready(reference_forward(tokens, params))
    assert bool(jnp.max(jnp.abs(out - ref)) < 5e-2)

    print("KERNEL_OK")
</pallas_src>

<mosaic_0001>
module attributes {stable_mosaic.version = 11 : i64} {
  func.func @lstm_fc_kernel(%arg0: memref<64x1xi32, #tpu.memory_space<vmem>>, %arg1: memref<128x64xbf16, #tpu.memory_space<vmem>>, %arg2: memref<64x128xbf16, #tpu.memory_space<vmem>>, %arg3: memref<32x128xbf16, #tpu.memory_space<vmem>>, %arg4: memref<1x128xf32, #tpu.memory_space<vmem>>, %arg5: memref<32x16xbf16, #tpu.memory_space<vmem>>, %arg6: memref<1x16xf32, #tpu.memory_space<vmem>>, %arg7: memref<8x128xf32, #tpu.memory_space<vmem>>) attributes {dimension_semantics = [], scalar_prefetch = 0 : i64, scratch_operands = 0 : i64, tpu.core_type = #tpu.core_type<tc>} {
    %c0 = arith.constant 0 : index
    %c0_0 = arith.constant 0 : index
    %0 = vector.load %arg0[%c0, %c0_0] : memref<64x1xi32, #tpu.memory_space<vmem>>, vector<64x1xi32>
    %1 = tpu.iota {dimensions = array<i32: 1>} : vector<64x128xi32>
    %2 = vector.broadcast %0 : vector<64x1xi32> to vector<64x128xi32>
    %3 = arith.cmpi eq, %1, %2 : vector<64x128xi32>
    %4 = arith.extui %3 : vector<64x128xi1> to vector<64x128xi32>
    %5 = arith.sitofp %4 : vector<64x128xi32> to vector<64x128xf32>
    %6 = arith.truncf %5 : vector<64x128xf32> to vector<64x128xbf16>
    %c0_1 = arith.constant 0 : index
    %c0_2 = arith.constant 0 : index
    %7 = vector.load %arg1[%c0_1, %c0_2] : memref<128x64xbf16, #tpu.memory_space<vmem>>, vector<128x64xbf16>
    %cst = arith.constant dense<0.000000e+00> : vector<64x64xf32>
    %8 = tpu.matmul %6, %7, %cst {dimension_numbers = #tpu.dot_dimension_numbers<[1], [0], [0], [1], [0, 0, 1, 1], [], []>} : vector<64x128xbf16>, vector<128x64xbf16>, vector<64x64xf32> -> vector<64x64xf32>
    %9 = arith.truncf %8 : vector<64x64xf32> to vector<64x64xbf16>
    %c0_3 = arith.constant 0 : index
    %c0_4 = arith.constant 0 : index
    %10 = vector.load %arg2[%c0_3, %c0_4] : memref<64x128xbf16, #tpu.memory_space<vmem>>, vector<64x128xbf16>
    %cst_5 = arith.constant dense<0.000000e+00> : vector<64x128xf32>
    %11 = tpu.matmul %9, %10, %cst_5 {dimension_numbers = #tpu.dot_dimension_numbers<[1], [0], [0], [1], [0, 0, 1, 1], [], []>} : vector<64x64xbf16>, vector<64x128xbf16>, vector<64x128xf32> -> vector<64x128xf32>
    %c0_6 = arith.constant 0 : index
    %c0_7 = arith.constant 0 : index
    %12 = vector.load %arg4[%c0_6, %c0_7] : memref<1x128xf32, #tpu.memory_space<vmem>>, vector<1x128xf32>
    %13 = vector.broadcast %12 : vector<1x128xf32> to vector<64x128xf32>
    %14 = arith.addf %11, %13 : vector<64x128xf32>
    %c0_8 = arith.constant 0 : index
    %c0_9 = arith.constant 0 : index
    %15 = vector.load %arg3[%c0_8, %c0_9] : memref<32x128xbf16, #tpu.memory_space<vmem>>, vector<32x128xbf16>
    %cst_10 = arith.constant 0.000000e+00 : f32
    %16 = vector.broadcast %cst_10 : f32 to vector<8x32xf32>
    %cst_11 = arith.constant 0.000000e+00 : f32
    %17 = vector.broadcast %cst_11 : f32 to vector<8x32xf32>
    %18 = arith.truncf %16 : vector<8x32xf32> to vector<8x32xbf16>
    %19 = vector.extract_strided_slice %14 {offsets = [0, 0], sizes = [8, 128], strides = [1, 1]} : vector<64x128xf32> to vector<8x128xf32>
    %cst_12 = arith.constant dense<0.000000e+00> : vector<8x128xf32>
    %20 = tpu.matmul %18, %15, %cst_12 {dimension_numbers = #tpu.dot_dimension_numbers<[1], [0], [0], [1], [0, 0, 1, 1], [], []>} : vector<8x32xbf16>, vector<32x128xbf16>, vector<8x128xf32> -> vector<8x128xf32>
    %21 = arith.addf %19, %20 : vector<8x128xf32>
    %22 = arith.negf %21 : vector<8x128xf32>
    %23 = math.exp %22 : vector<8x128xf32>
    %cst_13 = arith.constant 1.000000e+00 : f32
    %24 = vector.broadcast %cst_13 : f32 to vector<8x128xf32>
    %25 = arith.addf %24, %23 : vector<8x128xf32>
    %26 = arith.divf %24, %25 : vector<8x128xf32>
    %27 = math.tanh %21 : vector<8x128xf32>
    %28 = vector.extract_strided_slice %26 {offsets = [0, 0], sizes = [8, 32], strides = [1, 1]} : vector<8x128xf32> to vector<8x32xf32>
    %29 = vector.extract_strided_slice %26 {offsets = [0, 32], sizes = [8, 32], strides = [1, 1]} : vector<8x128xf32> to vector<8x32xf32>
    %30 = vector.extract_strided_slice %27 {offsets = [0, 64], sizes = [8, 32], strides = [1, 1]} : vector<8x128xf32> to vector<8x32xf32>
    %31 = vector.extract_strided_slice %26 {offsets = [0, 96], sizes = [8, 32], strides = [1, 1]} : vector<8x128xf32> to vector<8x32xf32>
    %32 = arith.mulf %29, %17 : vector<8x32xf32>
    %33 = arith.mulf %28, %30 : vector<8x32xf32>
    %34 = arith.addf %32, %33 : vector<8x32xf32>
    %35 = math.tanh %34 : vector<8x32xf32>
    %36 = arith.mulf %31, %35 : vector<8x32xf32>
    %37 = arith.truncf %36 : vector<8x32xf32> to vector<8x32xbf16>
    %38 = vector.extract_strided_slice %14 {offsets = [8, 0], sizes = [8, 128], strides = [1, 1]} : vector<64x128xf32> to vector<8x128xf32>
    %cst_14 = arith.constant dense<0.000000e+00> : vector<8x128xf32>
    %39 = tpu.matmul %37, %15, %cst_14 {dimension_numbers = #tpu.dot_dimension_numbers<[1], [0], [0], [1], [0, 0, 1, 1], [], []>} : vector<8x32xbf16>, vector<32x128xbf16>, vector<8x128xf32> -> vector<8x128xf32>
    %40 = arith.addf %38, %39 : vector<8x128xf32>
    %41 = arith.negf %40 : vector<8x128xf32>
    %42 = math.exp %41 : vector<8x128xf32>
    %cst_15 = arith.constant 1.000000e+00 : f32
    %43 = vector.broadcast %cst_15 : f32 to vector<8x128xf32>
    %44 = arith.addf %43, %42 : vector<8x128xf32>
    %45 = arith.divf %43, %44 : vector<8x128xf32>
    %46 = math.tanh %40 : vector<8x128xf32>
    %47 = vector.extract_strided_slice %45 {offsets = [0, 0], sizes = [8, 32], strides = [1, 1]} : vector<8x128xf32> to vector<8x32xf32>
    %48 = vector.extract_strided_slice %45 {offsets = [0, 32], sizes = [8, 32], strides = [1, 1]} : vector<8x128xf32> to vector<8x32xf32>
    %49 = vector.extract_strided_slice %46 {offsets = [0, 64], sizes = [8, 32], strides = [1, 1]} : vector<8x128xf32> to vector<8x32xf32>
    %50 = vector.extract_strided_slice %45 {offsets = [0, 96], sizes = [8, 32], strides = [1, 1]} : vector<8x128xf32> to vector<8x32xf32>
    %51 = arith.mulf %48, %34 : vector<8x32xf32>
    %52 = arith.mulf %47, %49 : vector<8x32xf32>
    %53 = arith.addf %51, %52 : vector<8x32xf32>
    %54 = math.tanh %53 : vector<8x32xf32>
    %55 = arith.mulf %50, %54 : vector<8x32xf32>
    %56 = arith.truncf %55 : vector<8x32xf32> to vector<8x32xbf16>
    %57 = vector.extract_strided_slice %14 {offsets = [16, 0], sizes = [8, 128], strides = [1, 1]} : vector<64x128xf32> to vector<8x128xf32>
    %cst_16 = arith.constant dense<0.000000e+00> : vector<8x128xf32>
    %58 = tpu.matmul %56, %15, %cst_16 {dimension_numbers = #tpu.dot_dimension_numbers<[1], [0], [0], [1], [0, 0, 1, 1], [], []>} : vector<8x32xbf16>, vector<32x128xbf16>, vector<8x128xf32> -> vector<8x128xf32>
    %59 = arith.addf %57, %58 : vector<8x128xf32>
    %60 = arith.negf %59 : vector<8x128xf32>
    %61 = math.exp %60 : vector<8x128xf32>
    %cst_17 = arith.constant 1.000000e+00 : f32
    %62 = vector.broadcast %cst_17 : f32 to vector<8x128xf32>
    %63 = arith.addf %62, %61 : vector<8x128xf32>
    %64 = arith.divf %62, %63 : vector<8x128xf32>
    %65 = math.tanh %59 : vector<8x128xf32>
    %66 = vector.extract_strided_slice %64 {offsets = [0, 0], sizes = [8, 32], strides = [1, 1]} : vector<8x128xf32> to vector<8x32xf32>
    %67 = vector.extract_strided_slice %64 {offsets = [0, 32], sizes = [8, 32], strides = [1, 1]} : vector<8x128xf32> to vector<8x32xf32>
    %68 = vector.extract_strided_slice %65 {offsets = [0, 64], sizes = [8, 32], strides = [1, 1]} : vector<8x128xf32> to vector<8x32xf32>
    %69 = vector.extract_strided_slice %64 {offsets = [0, 96], sizes = [8, 32], strides = [1, 1]} : vector<8x128xf32> to vector<8x32xf32>
    %70 = arith.mulf %67, %53 : vector<8x32xf32>
    %71 = arith.mulf %66, %68 : vector<8x32xf32>
    %72 = arith.addf %70, %71 : vector<8x32xf32>
    %73 = math.tanh %72 : vector<8x32xf32>
    %74 = arith.mulf %69, %73 : vector<8x32xf32>
    %75 = arith.truncf %74 : vector<8x32xf32> to vector<8x32xbf16>
    %76 = vector.extract_strided_slice %14 {offsets = [24, 0], sizes = [8, 128], strides = [1, 1]} : vector<64x128xf32> to vector<8x128xf32>
    %cst_18 = arith.constant dense<0.000000e+00> : vector<8x128xf32>
    %77 = tpu.matmul %75, %15, %cst_18 {dimension_numbers = #tpu.dot_dimension_numbers<[1], [0], [0], [1], [0, 0, 1, 1], [], []>} : vector<8x32xbf16>, vector<32x128xbf16>, vector<8x128xf32> -> vector<8x128xf32>
    %78 = arith.addf %76, %77 : vector<8x128xf32>
    %79 = arith.negf %78 : vector<8x128xf32>
    %80 = math.exp %79 : vector<8x128xf32>
    %cst_19 = arith.constant 1.000000e+00 : f32
    %81 = vector.broadcast %cst_19 : f32 to vector<8x128xf32>
    %82 = arith.addf %81, %80 : vector<8x128xf32>
    %83 = arith.divf %81, %82 : vector<8x128xf32>
    %84 = math.tanh %78 : vector<8x128xf32>
    %85 = vector.extract_strided_slice %83 {offsets = [0, 0], sizes = [8, 32], strides = [1, 1]} : vector<8x128xf32> to vector<8x32xf32>
    %86 = vector.extract_strided_slice %83 {offsets = [0, 32], sizes = [8, 32], strides = [1, 1]} : vector<8x128xf32> to vector<8x32xf32>
    %87 = vector.extract_strided_slice %84 {offsets = [0, 64], sizes = [8, 32], strides = [1, 1]} : vector<8x128xf32> to vector<8x32xf32>
    %88 = vector.extract_strided_slice %83 {offsets = [0, 96], sizes = [8, 32], strides = [1, 1]} : vector<8x128xf32> to vector<8x32xf32>
    %89 = arith.mulf %86, %72 : vector<8x32xf32>
    %90 = arith.mulf %85, %87 : vector<8x32xf32>
    %91 = arith.addf %89, %90 : vector<8x32xf32>
    %92 = math.tanh %91 : vector<8x32xf32>
    %93 = arith.mulf %88, %92 : vector<8x32xf32>
    %94 = arith.truncf %93 : vector<8x32xf32> to vector<8x32xbf16>
    %95 = vector.extract_strided_slice %14 {offsets = [32, 0], sizes = [8, 128], strides = [1, 1]} : vector<64x128xf32> to vector<8x128xf32>
    %cst_20 = arith.constant dense<0.000000e+00> : vector<8x128xf32>
    %96 = tpu.matmul %94, %15, %cst_20 {dimension_numbers = #tpu.dot_dimension_numbers<[1], [0], [0], [1], [0, 0, 1, 1], [], []>} : vector<8x32xbf16>, vector<32x128xbf16>, vector<8x128xf32> -> vector<8x128xf32>
    %97 = arith.addf %95, %96 : vector<8x128xf32>
    %98 = arith.negf %97 : vector<8x128xf32>
    %99 = math.exp %98 : vector<8x128xf32>
    %cst_21 = arith.constant 1.000000e+00 : f32
    %100 = vector.broadcast %cst_21 : f32 to vector<8x128xf32>
    %101 = arith.addf %100, %99 : vector<8x128xf32>
    %102 = arith.divf %100, %101 : vector<8x128xf32>
    %103 = math.tanh %97 : vector<8x128xf32>
    %104 = vector.extract_strided_slice %102 {offsets = [0, 0], sizes = [8, 32], strides = [1, 1]} : vector<8x128xf32> to vector<8x32xf32>
    %105 = vector.extract_strided_slice %102 {offsets = [0, 32], sizes = [8, 32], strides = [1, 1]} : vector<8x128xf32> to vector<8x32xf32>
    %106 = vector.extract_strided_slice %103 {offsets = [0, 64], sizes = [8, 32], strides = [1, 1]} : vector<8x128xf32> to vector<8x32xf32>
    %107 = vector.extract_strided_slice %102 {offsets = [0, 96], sizes = [8, 32], strides = [1, 1]} : vector<8x128xf32> to vector<8x32xf32>
    %108 = arith.mulf %105, %91 : vector<8x32xf32>
    %109 = arith.mulf %104, %106 : vector<8x32xf32>
    %110 = arith.addf %108, %109 : vector<8x32xf32>
    %111 = math.tanh %110 : vector<8x32xf32>
    %112 = arith.mulf %107, %111 : vector<8x32xf32>
    %113 = arith.truncf %112 : vector<8x32xf32> to vector<8x32xbf16>
    %114 = vector.extract_strided_slice %14 {offsets = [40, 0], sizes = [8, 128], strides = [1, 1]} : vector<64x128xf32> to vector<8x128xf32>
    %cst_22 = arith.constant dense<0.000000e+00> : vector<8x128xf32>
    %115 = tpu.matmul %113, %15, %cst_22 {dimension_numbers = #tpu.dot_dimension_numbers<[1], [0], [0], [1], [0, 0, 1, 1], [], []>} : vector<8x32xbf16>, vector<32x128xbf16>, vector<8x128xf32> -> vector<8x128xf32>
    %116 = arith.addf %114, %115 : vector<8x128xf32>
    %117 = arith.negf %116 : vector<8x128xf32>
    %118 = math.exp %117 : vector<8x128xf32>
    %cst_23 = arith.constant 1.000000e+00 : f32
    %119 = vector.broadcast %cst_23 : f32 to vector<8x128xf32>
    %120 = arith.addf %119, %118 : vector<8x128xf32>
    %121 = arith.divf %119, %120 : vector<8x128xf32>
    %122 = math.tanh %116 : vector<8x128xf32>
    %123 = vector.extract_strided_slice %121 {offsets = [0, 0], sizes = [8, 32], strides = [1, 1]} : vector<8x128xf32> to vector<8x32xf32>
    %124 = vector.extract_strided_slice %121 {offsets = [0, 32], sizes = [8, 32], strides = [1, 1]} : vector<8x128xf32> to vector<8x32xf32>
    %125 = vector.extract_strided_slice %122 {offsets = [0, 64], sizes = [8, 32], strides = [1, 1]} : vector<8x128xf32> to vector<8x32xf32>
    %126 = vector.extract_strided_slice %121 {offsets = [0, 96], sizes = [8, 32], strides = [1, 1]} : vector<8x128xf32> to vector<8x32xf32>
    %127 = arith.mulf %124, %110 : vector<8x32xf32>
    %128 = arith.mulf %123, %125 : vector<8x32xf32>
    %129 = arith.addf %127, %128 : vector<8x32xf32>
    %130 = math.tanh %129 : vector<8x32xf32>
    %131 = arith.mulf %126, %130 : vector<8x32xf32>
    %132 = arith.truncf %131 : vector<8x32xf32> to vector<8x32xbf16>
    %133 = vector.extract_strided_slice %14 {offsets = [48, 0], sizes = [8, 128], strides = [1, 1]} : vector<64x128xf32> to vector<8x128xf32>
    %cst_24 = arith.constant dense<0.000000e+00> : vector<8x128xf32>
    %134 = tpu.matmul %132, %15, %cst_24 {dimension_numbers = #tpu.dot_dimension_numbers<[1], [0], [0], [1], [0, 0, 1, 1], [], []>} : vector<8x32xbf16>, vector<32x128xbf16>, vector<8x128xf32> -> vector<8x128xf32>
    %135 = arith.addf %133, %134 : vector<8x128xf32>
    %136 = arith.negf %135 : vector<8x128xf32>
    %137 = math.exp %136 : vector<8x128xf32>
    %cst_25 = arith.constant 1.000000e+00 : f32
    %138 = vector.broadcast %cst_25 : f32 to vector<8x128xf32>
    %139 = arith.addf %138, %137 : vector<8x128xf32>
    %140 = arith.divf %138, %139 : vector<8x128xf32>
    %141 = math.tanh %135 : vector<8x128xf32>
    %142 = vector.extract_strided_slice %140 {offsets = [0, 0], sizes = [8, 32], strides = [1, 1]} : vector<8x128xf32> to vector<8x32xf32>
    %143 = vector.extract_strided_slice %140 {offsets = [0, 32], sizes = [8, 32], strides = [1, 1]} : vector<8x128xf32> to vector<8x32xf32>
    %144 = vector.extract_strided_slice %141 {offsets = [0, 64], sizes = [8, 32], strides = [1, 1]} : vector<8x128xf32> to vector<8x32xf32>
    %145 = vector.extract_strided_slice %140 {offsets = [0, 96], sizes = [8, 32], strides = [1, 1]} : vector<8x128xf32> to vector<8x32xf32>
    %146 = arith.mulf %143, %129 : vector<8x32xf32>
    %147 = arith.mulf %142, %144 : vector<8x32xf32>
    %148 = arith.addf %146, %147 : vector<8x32xf32>
    %149 = math.tanh %148 : vector<8x32xf32>
    %150 = arith.mulf %145, %149 : vector<8x32xf32>
    %151 = arith.truncf %150 : vector<8x32xf32> to vector<8x32xbf16>
    %152 = vector.extract_strided_slice %14 {offsets = [56, 0], sizes = [8, 128], strides = [1, 1]} : vector<64x128xf32> to vector<8x128xf32>
    %cst_26 = arith.constant dense<0.000000e+00> : vector<8x128xf32>
    %153 = tpu.matmul %151, %15, %cst_26 {dimension_numbers = #tpu.dot_dimension_numbers<[1], [0], [0], [1], [0, 0, 1, 1], [], []>} : vector<8x32xbf16>, vector<32x128xbf16>, vector<8x128xf32> -> vector<8x128xf32>
    %154 = arith.addf %152, %153 : vector<8x128xf32>
    %155 = arith.negf %154 : vector<8x128xf32>
    %156 = math.exp %155 : vector<8x128xf32>
    %cst_27 = arith.constant 1.000000e+00 : f32
    %157 = vector.broadcast %cst_27 : f32 to vector<8x128xf32>
    %158 = arith.addf %157, %156 : vector<8x128xf32>
    %159 = arith.divf %157, %158 : vector<8x128xf32>
    %160 = math.tanh %154 : vector<8x128xf32>
    %161 = vector.extract_strided_slice %159 {offsets = [0, 0], sizes = [8, 32], strides = [1, 1]} : vector<8x128xf32> to vector<8x32xf32>
    %162 = vector.extract_strided_slice %159 {offsets = [0, 32], sizes = [8, 32], strides = [1, 1]} : vector<8x128xf32> to vector<8x32xf32>
    %163 = vector.extract_strided_slice %160 {offsets = [0, 64], sizes = [8, 32], strides = [1, 1]} : vector<8x128xf32> to vector<8x32xf32>
    %164 = vector.extract_strided_slice %159 {offsets = [0, 96], sizes = [8, 32], strides = [1, 1]} : vector<8x128xf32> to vector<8x32xf32>
    %165 = arith.mulf %162, %148 : vector<8x32xf32>
    %166 = arith.mulf %161, %163 : vector<8x32xf32>
    %167 = arith.addf %165, %166 : vector<8x32xf32>
    %168 = math.tanh %167 : vector<8x32xf32>
    %169 = arith.mulf %164, %168 : vector<8x32xf32>
    %170 = tpu.concatenate %36, %55, %74, %93, %112, %131, %150, %169 in 0 : vector<8x32xf32>, vector<8x32xf32>, vector<8x32xf32>, vector<8x32xf32>, vector<8x32xf32>, vector<8x32xf32>, vector<8x32xf32>, vector<8x32xf32> -> vector<64x32xf32>
    %171 = arith.truncf %170 : vector<64x32xf32> to vector<64x32xbf16>
    %c0_28 = arith.constant 0 : index
    %c0_29 = arith.constant 0 : index
    %172 = vector.load %arg5[%c0_28, %c0_29] : memref<32x16xbf16, #tpu.memory_space<vmem>>, vector<32x16xbf16>
    %cst_30 = arith.constant dense<0.000000e+00> : vector<64x16xf32>
    %173 = tpu.matmul %171, %172, %cst_30 {dimension_numbers = #tpu.dot_dimension_numbers<[1], [0], [0], [1], [0, 0, 1, 1], [], []>} : vector<64x32xbf16>, vector<32x16xbf16>, vector<64x16xf32> -> vector<64x16xf32>
    %c0_31 = arith.constant 0 : index
    %c0_32 = arith.constant 0 : index
    %174 = vector.load %arg6[%c0_31, %c0_32] : memref<1x16xf32, #tpu.memory_space<vmem>>, vector<1x16xf32>
    %175 = vector.broadcast %174 : vector<1x16xf32> to vector<64x16xf32>
    %176 = arith.addf %173, %175 : vector<64x16xf32>
    %177 = arith.negf %176 : vector<64x16xf32>
    %178 = math.exp %177 : vector<64x16xf32>
    %cst_33 = arith.constant 1.000000e+00 : f32
    %179 = vector.broadcast %cst_33 : f32 to vector<64x16xf32>
    %180 = arith.addf %179, %178 : vector<64x16xf32>
    %181 = arith.divf %179, %180 : vector<64x16xf32>
    %182 = vector.extract_strided_slice %181 {offsets = [0, 0], sizes = [8, 16], strides = [1, 1]} : vector<64x16xf32> to vector<8x16xf32>
    %183 = vector.extract_strided_slice %181 {offsets = [8, 0], sizes = [8, 16], strides = [1, 1]} : vector<64x16xf32> to vector<8x16xf32>
    %184 = vector.extract_strided_slice %181 {offsets = [16, 0], sizes = [8, 16], strides = [1, 1]} : vector<64x16xf32> to vector<8x16xf32>
    %185 = vector.extract_strided_slice %181 {offsets = [24, 0], sizes = [8, 16], strides = [1, 1]} : vector<64x16xf32> to vector<8x16xf32>
    %186 = vector.extract_strided_slice %181 {offsets = [32, 0], sizes = [8, 16], strides = [1, 1]} : vector<64x16xf32> to vector<8x16xf32>
    %187 = vector.extract_strided_slice %181 {offsets = [40, 0], sizes = [8, 16], strides = [1, 1]} : vector<64x16xf32> to vector<8x16xf32>
    %188 = vector.extract_strided_slice %181 {offsets = [48, 0], sizes = [8, 16], strides = [1, 1]} : vector<64x16xf32> to vector<8x16xf32>
    %189 = vector.extract_strided_slice %181 {offsets = [56, 0], sizes = [8, 16], strides = [1, 1]} : vector<64x16xf32> to vector<8x16xf32>
    %190 = tpu.concatenate %182, %183, %184, %185, %186, %187, %188, %189 in 1 : vector<8x16xf32>, vector<8x16xf32>, vector<8x16xf32>, vector<8x16xf32>, vector<8x16xf32>, vector<8x16xf32>, vector<8x16xf32>, vector<8x16xf32> -> vector<8x128xf32>
    %c0_34 = arith.constant 0 : index
    %c0_35 = arith.constant 0 : index
    %191 = vector.load %arg7[%c0_34, %c0_35] : memref<8x128xf32, #tpu.memory_space<vmem>>, vector<8x128xf32>
    tpu.vector_store %arg7[%c0_34, %c0_35], %190 {strides = array<i32>} : memref<8x128xf32, #tpu.memory_space<vmem>>, vector<8x128xf32>,
    return
  }
}

</mosaic_0001>

<llo_original>
// kernel: tpu_custom_call.1
$region0: #{tpu_custom_call.1}
  #allocation0 [shape = 'u32[]', space=smem, size = 0x4, offset = 0x4, fixed_abs, tag = 'smem constant byte address 0x4 - core index']
  #allocation1 [shape = 'u32[144,128]{1,0:T(1,128)}', space=vmem, size = 0x12000, scoped, tag = 'internal scratch']
  %s0 = inlined_call_operand.vmem [shape: s32[64,1], index: 0, kind: input, shape index: {}]
  %s1 = inlined_call_operand.vmem [shape: bf16[128,64], index: 1, kind: input, shape index: {}]
  %s2 = inlined_call_operand.vmem [shape: bf16[64,128], index: 2, kind: input, shape index: {}]
  %s3 = inlined_call_operand.vmem [shape: bf16[32,128], index: 3, kind: input, shape index: {}]
  %s4 = inlined_call_operand.vmem [shape: f32[1,128], index: 4, kind: input, shape index: {}]
  %s5 = inlined_call_operand.vmem [shape: bf16[32,16], index: 5, kind: input, shape index: {}]
  %s6 = inlined_call_operand.vmem [shape: f32[1,16], index: 6, kind: input, shape index: {}]
  %s7 = inlined_call_operand.hbm [shape: f32[8,128], index: 7, kind: output, shape index: {}]
  %s8 = sld [smem:[#allocation0]]
  $region38: #{tpu_custom_call.1} parent=0
    _
  %s10 = ssub.s32 1, %s8
  %s11 = scalar_select 0, %s10, %s8
  $region1: #{tpu_custom_call.1} parent=0
    #allocation2 [shape = 'u8[4096]{0}', space=vmem, size = 0x1000, scoped, tag = 'output window, operand 0, single buffered']
    #allocation3 [shape = 's32[1]{0}', space=sflag, size = 0x4, scoped, tag = 'scoped memory for tpu_custom_call.1']
    %12 = vsyncpa [#allocation3], 0
    // Predicated region
    $region2: #{tpu_custom_call.1} parent=1 // pred_check
      _
    $region3: #{tpu_custom_call.1} parent=1 // pred_check_branch
      %14 = sbr.rel (0) target = $region5
    $region4: #{tpu_custom_call.1} parent=1 // pred_region
      _
    $region5: #{tpu_custom_call.1} parent=1 // pred_fallthru
      _
    // Predicated region
    $region6: #{tpu_custom_call.1} parent=1 // pred_check
      _
    $region7: #{tpu_custom_call.1} parent=1 // pred_check_branch
      %16 = sbr.rel (0) target = $region9
    $region8: #{tpu_custom_call.1} parent=1 // pred_region
      _
    $region9: #{tpu_custom_call.1} parent=1 // pred_fallthru
      _
    // Predicated region
    $region10: #{tpu_custom_call.1} parent=1 // pred_check
      _
    $region11: #{tpu_custom_call.1} parent=1 // pred_check_branch
      %18 = sbr.rel (0) target = $region13
    $region12: #{tpu_custom_call.1} parent=1 // pred_region
      _
    $region13: #{tpu_custom_call.1} parent=1 // pred_fallthru
      _
    // Predicated region
    $region14: #{tpu_custom_call.1} parent=1 // pred_check
      _
    $region15: #{tpu_custom_call.1} parent=1 // pred_check_branch
      %20 = sbr.rel (0) target = $region17
    $region16: #{tpu_custom_call.1} parent=1 // pred_region
      _
    $region17: #{tpu_custom_call.1} parent=1 // pred_fallthru
      _
    // Predicated region
    $region18: #{tpu_custom_call.1} parent=1 // pred_check
      _
    $region19: #{tpu_custom_call.1} parent=1 // pred_check_branch
      %22 = sbr.rel (0) target = $region21
    $region20: #{tpu_custom_call.1} parent=1 // pred_region
      _
    $region21: #{tpu_custom_call.1} parent=1 // pred_fallthru
      _
    // Predicated region
    $region22: #{tpu_custom_call.1} parent=1 // pred_check
      _
    $region23: #{tpu_custom_call.1} parent=1 // pred_check_branch
      %24 = sbr.rel (0) target = $region25
    $region24: #{tpu_custom_call.1} parent=1 // pred_region
      _
    $region25: #{tpu_custom_call.1} parent=1 // pred_fallthru
      _
    // Predicated region
    $region26: #{tpu_custom_call.1} parent=1 // pred_check
      _
    $region27: #{tpu_custom_call.1} parent=1 // pred_check_branch
      %26 = sbr.rel (0) target = $region29
    $region28: #{tpu_custom_call.1} parent=1 // pred_region
      _
    $region29: #{tpu_custom_call.1} parent=1 // pred_fallthru
      _
    %v28 = vld [vmem:[%s0] sm:$0xff]
    %v29 = vld [vmem:[%s0 + $0x8] sm:$0xff]
    %v30 = vld [vmem:[%s0 + $0x10] sm:$0xff]
    %v31 = vld [vmem:[%s0 + $0x18] sm:$0xff]
    %v32 = vld [vmem:[%s0 + $0x20] sm:$0xff]
    %v33 = vld [vmem:[%s0 + $0x28] sm:$0xff]
    %v34 = vld [vmem:[%s0 + $0x30] sm:$0xff]
    %v35 = vld [vmem:[%s0 + $0x38] sm:$0xff]
    %v36 = vlaneseq
    %v37 = vand.u32 %v36, 127
    %38 = vset.pattern.permute.xlu0 0
    %39 = vperm.xlu0 %38, %v28
    %v40 = vpop.permute.xlu0 %39
    %41 = vset.pattern.permute.xlu0 0
    %42 = vperm.xlu0 %41, %v29
    %v43 = vpop.permute.xlu0 %42
    %44 = vset.pattern.permute.xlu0 0
    %45 = vperm.xlu0 %44, %v30
    %v46 = vpop.permute.xlu0 %45
    %47 = vset.pattern.permute.xlu0 0
    %48 = vperm.xlu0 %47, %v31
    %v49 = vpop.permute.xlu0 %48
    %50 = vset.pattern.permute.xlu0 0
    %51 = vperm.xlu0 %50, %v32
    %v52 = vpop.permute.xlu0 %51
    %53 = vset.pattern.permute.xlu0 0
    %54 = vperm.xlu0 %53, %v33
    %v55 = vpop.permute.xlu0 %54
    %56 = vset.pattern.permute.xlu0 0
    %57 = vperm.xlu0 %56, %v34
    %v58 = vpop.permute.xlu0 %57
    %59 = vset.pattern.permute.xlu0 0
    %60 = vperm.xlu0 %59, %v35
    %v61 = vpop.permute.xlu0 %60
    %vm62 = vcmp.eq.s32.totalorder %v37, %v40
    %vm63 = vcmp.eq.s32.totalorder %v37, %v43
    %vm64 = vcmp.eq.s32.totalorder %v37, %v46
    %vm65 = vcmp.eq.s32.totalorder %v37, %v49
    %vm66 = vcmp.eq.s32.totalorder %v37, %v52
    %vm67 = vcmp.eq.s32.totalorder %v37, %v55
    %vm68 = vcmp.eq.s32.totalorder %v37, %v58
    %vm69 = vcmp.eq.s32.totalorder %v37, %v61
    %v70 = vsel %vm62, 1, 0
    %v71 = vsel %vm63, 1, 0
    %v72 = vsel %vm64, 1, 0
    %v73 = vsel %vm65, 1, 0
    %v74 = vsel %vm66, 1, 0
    %v75 = vsel %vm67, 1, 0
    %v76 = vsel %vm68, 1, 0
    %v77 = vsel %vm69, 1, 0
    %v78 = vcvt.s32.f32 %v70
    %v79 = vcvt.s32.f32 %v71
    %v80 = vcvt.s32.f32 %v72
    %v81 = vcvt.s32.f32 %v73
    %v82 = vcvt.s32.f32 %v74
    %v83 = vcvt.s32.f32 %v75
    %v84 = vcvt.s32.f32 %v76
    %v85 = vcvt.s32.f32 %v77
    %v86 = vpack.c.bf16 %v79, %v78
    %v87 = vpack.c.bf16 %v81, %v80
    %v88 = vpack.c.bf16 %v83, %v82
    %v89 = vpack.c.bf16 %v85, %v84
    %v90 = vld [vmem:[%s1] sm:$0xf]
    %v91 = vld [vmem:[%s1 + $0x4] sm:$0xf]
    %v92 = vld [vmem:[%s1 + $0x8] sm:$0xf]
    %v93 = vld [vmem:[%s1 + $0xc] sm:$0xf]
    %v94 = vld [vmem:[%s1 + $0x10] sm:$0xf]
    %v95 = vld [vmem:[%s1 + $0x14] sm:$0xf]
    %v96 = vld [vmem:[%s1 + $0x18] sm:$0xf]
    %v97 = vld [vmem:[%s1 + $0x1c] sm:$0xf]
    %v98 = vld [vmem:[%s1 + $0x20] sm:$0xf]
    %v99 = vld [vmem:[%s1 + $0x24] sm:$0xf]
    %v100 = vld [vmem:[%s1 + $0x28] sm:$0xf]
    %v101 = vld [vmem:[%s1 + $0x2c] sm:$0xf]
    %v102 = vld [vmem:[%s1 + $0x30] sm:$0xf]
    %v103 = vld [vmem:[%s1 + $0x34] sm:$0xf]
    %v104 = vld [vmem:[%s1 + $0x38] sm:$0xf]
    %v105 = vld [vmem:[%s1 + $0x3c] sm:$0xf]
    %v122 = vunpack.c.l.b16 %v90
    %v123 = vunpack.c.l.b16 %v91
    %v124 = vunpack.c.l.b16 %v92
    %v125 = vunpack.c.l.b16 %v93
    %v126 = vunpack.c.l.b16 %v94
    %v127 = vunpack.c.l.b16 %v95
    %v128 = vunpack.c.l.b16 %v96
    %v129 = vunpack.c.l.b16 %v97
    %v130 = vunpack.c.l.b16 %v98
    %v131 = vunpack.c.l.b16 %v99
    %v132 = vunpack.c.l.b16 %v100
    %v133 = vunpack.c.l.b16 %v101
    %v134 = vunpack.c.l.b16 %v102
    %v135 = vunpack.c.l.b16 %v103
    %v136 = vunpack.c.l.b16 %v104
    %v137 = vunpack.c.l.b16 %v105
    %v138 = vpack.c.b16 %v123, %v122
    %v139 = vpack.c.b16 %v125, %v124
    %v140 = vpack.c.b16 %v127, %v126
    %v141 = vpack.c.b16 %v129, %v128
    %v142 = vpack.c.b16 %v131, %v130
    %v143 = vpack.c.b16 %v133, %v132
    %v144 = vpack.c.b16 %v135, %v134
    %v145 = vpack.c.b16 %v137, %v136
    %154 = vmatprep.subr.bf16.mxu0 0
    %155 = vmatpush1.bf16.msra.mxu0 %v145
    %156 = vmatprep.subr.bf16.mxu0 0
    %157 = vmatpush1.bf16.msra.mxu0 %v144
    %158 = vmatprep.subr.bf16.mxu0 0
    %159 = vmatpush1.bf16.msra.mxu0 %v143
    %160 = vmatprep.subr.bf16.mxu0 0
    %161 = vmatpush1.bf16.msra.mxu0 %v142
    %162 = vmatprep.subr.bf16.mxu0 0
    %163 = vmatpush1.bf16.msra.mxu0 %v141
    %164 = vmatprep.subr.bf16.mxu0 0
    %165 = vmatpush1.bf16.msra.mxu0 %v140
    %166 = vmatprep.subr.bf16.mxu0 0
    %167 = vmatpush1.bf16.msra.mxu0 %v139
    %168 = vmatprep.subr.bf16.mxu0 0
    %169 = vmatpush1.bf16.msra.mxu0 %v138
    %170 = vmatprep.subr.bf16.mxu0 0
    %171 = vmatpush2.bf16.msra.mxu0 0
    %172 = vmatprep.subr.bf16.mxu0 0
    %173 = vmatpush2.bf16.msra.mxu0 0
    %174 = vmatprep.subr.bf16.mxu0 0
    %175 = vmatpush2.bf16.msra.mxu0 0
    %176 = vmatprep.subr.bf16.mxu0 0
    %177 = vmatpush2.bf16.msra.mxu0 0
    %178 = vmatprep.subr.bf16.mxu0 0
    %179 = vmatpush2.bf16.msra.mxu0 0
    %180 = vmatprep.subr.bf16.mxu0 0
    %181 = vmatpush2.bf16.msra.mxu0 0
    %182 = vmatprep.subr.bf16.mxu0 0
    %183 = vmatpush2.bf16.msra.mxu0 0
    %184 = vmatprep.subr.bf16.mxu0 0
    %185 = vmatpush2.bf16.msra.mxu0 0
    %186 = vmatprep.mubr.bf16.mxu0 0
    %187 = vmatmul.mubr.bf16.gmra.mxu0 %v86
    %v188 = vpop.f32.mrf.mxu0
    %v189 = vadd.f32 0.0, %v188
    %v190 = vpop.f32.mrf.mxu0
    %v191 = vpop.f32.mrf.mxu0
    %v192 = vadd.f32 0.0, %v191
    %v193 = vpop.f32.mrf.mxu0
    %194 = vmatprep.mubr.bf16.mxu0 0
    %195 = vmatmul.mubr.bf16.gmra.mxu0 %v87
    %v196 = vpop.f32.mrf.mxu0
    %v197 = vadd.f32 0.0, %v196
    %v198 = vpop.f32.mrf.mxu0
    %v199 = vpop.f32.mrf.mxu0
    %v200 = vadd.f32 0.0, %v199
    %v201 = vpop.f32.mrf.mxu0
    %202 = vmatprep.mubr.bf16.mxu0 0
    %203 = vmatmul.mubr.bf16.gmra.mxu0 %v88
    %v204 = vpop.f32.mrf.mxu0
    %v205 = vadd.f32 0.0, %v204
    %v206 = vpop.f32.mrf.mxu0
    %v207 = vpop.f32.mrf.mxu0
    %v208 = vadd.f32 0.0, %v207
    %v209 = vpop.f32.mrf.mxu0
    %210 = vmatprep.mubr.bf16.mxu0 0
    %211 = vmatmul.mubr.bf16.gmra.mxu0 %v89
    %v212 = vpop.f32.mrf.mxu0
    %v213 = vadd.f32 0.0, %v212
    %v214 = vpop.f32.mrf.mxu0
    %v215 = vpop.f32.mrf.mxu0
    %v216 = vadd.f32 0.0, %v215
    %v217 = vpop.f32.mrf.mxu0
    %218 = vdwg.mxu0
    %v219 = vpack.c.bf16 %v192, %v189
    %v220 = vpack.c.bf16 %v200, %v197
    %v221 = vpack.c.bf16 %v208, %v205
    %v222 = vpack.c.bf16 %v216, %v213
    %v223 = vld [vmem:[%s2] sm:$0xf]
    %v224 = vld [vmem:[%s2 + $0x4] sm:$0xf]
    %v225 = vld [vmem:[%s2 + $0x8] sm:$0xf]
    %v226 = vld [vmem:[%s2 + $0xc] sm:$0xf]
    %v227 = vld [vmem:[%s2 + $0x10] sm:$0xf]
    %v228 = vld [vmem:[%s2 + $0x14] sm:$0xf]
    %v229 = vld [vmem:[%s2 + $0x18] sm:$0xf]
    %v230 = vld [vmem:[%s2 + $0x1c] sm:$0xf]
    %v231 = vld [vmem:[%s4] sm:$0x1]
    %v233 = vlaneseq
    %v234 = vshrl.u32 %v233, 7
    %v235 = vsub.s32 0, %v234
    %v236 = vrot.slane %v231, %v235
    %v246 = vunpack.c.l.b16 %v223
    %v247 = vunpack.c.l.b16 %v224
    %v248 = vunpack.c.l.b16 %v225
    %v249 = vunpack.c.l.b16 %v226
    %v250 = vunpack.c.l.b16 %v227
    %v251 = vunpack.c.l.b16 %v228
    %v252 = vunpack.c.l.b16 %v229
    %v253 = vunpack.c.l.b16 %v230
    %v254 = vpack.c.b16 %v247, %v246
    %v255 = vpack.c.b16 %v249, %v248
    %v256 = vpack.c.b16 %v251, %v250
    %v257 = vpack.c.b16 %v253, %v252
    %vm262 = vcmask 523264
    %v264 = vsel %vm262, %v219, 0
    %v267 = vsel %vm262, %v220, 0
    %v270 = vsel %vm262, %v221, 0
    %v273 = vsel %vm262, %v222, 0
    %275 = vmatprep.subr.bf16.mxu0 0
    %276 = vmatpush1.bf16.msra.mxu0 0
    %277 = vmatprep.subr.bf16.mxu0 0
    %278 = vmatpush1.bf16.msra.mxu0 0
    %279 = vmatprep.subr.bf16.mxu0 0
    %280 = vmatpush1.bf16.msra.mxu0 0
    %281 = vmatprep.subr.bf16.mxu0 0
    %282 = vmatpush1.bf16.msra.mxu0 0
    %283 = vmatprep.subr.bf16.mxu0 0
    %284 = vmatpush1.bf16.msra.mxu0 %v257
    %285 = vmatprep.subr.bf16.mxu0 0
    %286 = vmatpush1.bf16.msra.mxu0 %v256
    %287 = vmatprep.subr.bf16.mxu0 0
    %288 = vmatpush1.bf16.msra.mxu0 %v255
    %289 = vmatprep.subr.bf16.mxu0 0
    %290 = vmatpush1.bf16.msra.mxu0 %v254
    %291 = vmatprep.subr.bf16.mxu0 0
    %292 = vmatpush2.bf16.msra.mxu0 0
    %293 = vmatprep.subr.bf16.mxu0 0
    %294 = vmatpush2.bf16.msra.mxu0 0
    %295 = vmatprep.subr.bf16.mxu0 0
    %296 = vmatpush2.bf16.msra.mxu0 0
    %297 = vmatprep.subr.bf16.mxu0 0
    %298 = vmatpush2.bf16.msra.mxu0 0
    %299 = vmatprep.subr.bf16.mxu0 0
    %300 = vmatpush2.bf16.msra.mxu0 0
    %301 = vmatprep.subr.bf16.mxu0 0
    %302 = vmatpush2.bf16.msra.mxu0 0
    %303 = vmatprep.subr.bf16.mxu0 0
    %304 = vmatpush2.bf16.msra.mxu0 0
    %305 = vmatprep.subr.bf16.mxu0 0
    %306 = vmatpush2.bf16.msra.mxu0 0
    %307 = vmatprep.mubr.bf16.mxu0 0
    %308 = vmatmul.mubr.bf16.gmra.mxu0 %v264
    %v309 = vpop.f32.mrf.mxu0
    %v310 = vadd.f32 %v236, %v309
    %v311 = vpop.f32.mrf.mxu0
    %v312 = vpop.f32.mrf.mxu0
    %v313 = vadd.f32 %v236, %v312
    %v314 = vpop.f32.mrf.mxu0
    %315 = vmatprep.mubr.bf16.mxu0 0
    %316 = vmatmul.mubr.bf16.gmra.mxu0 %v267
    %v317 = vpop.f32.mrf.mxu0
    %v318 = vadd.f32 %v236, %v317
    %v319 = vpop.f32.mrf.mxu0
    %v320 = vpop.f32.mrf.mxu0
    %v321 = vadd.f32 %v236, %v320
    %v322 = vpop.f32.mrf.mxu0
    %323 = vmatprep.mubr.bf16.mxu0 0
    %324 = vmatmul.mubr.bf16.gmra.mxu0 %v270
    %v325 = vpop.f32.mrf.mxu0
    %v326 = vadd.f32 %v236, %v325
    %v327 = vpop.f32.mrf.mxu0
    %v328 = vpop.f32.mrf.mxu0
    %v329 = vadd.f32 %v236, %v328
    %v330 = vpop.f32.mrf.mxu0
    %331 = vmatprep.mubr.bf16.mxu0 0
    %332 = vmatmul.mubr.bf16.gmra.mxu0 %v273
    %v333 = vpop.f32.mrf.mxu0
    %v334 = vadd.f32 %v236, %v333
    %v335 = vpop.f32.mrf.mxu0
    %v336 = vpop.f32.mrf.mxu0
    %v337 = vadd.f32 %v236, %v336
    %v338 = vpop.f32.mrf.mxu0
    %339 = vdwg.mxu0
    %v340 = vld [vmem:[%s3] sm:$0xf]
    %v341 = vld [vmem:[%s3 + $0x4] sm:$0xf]
    %v342 = vld [vmem:[%s3 + $0x8] sm:$0xf]
    %v343 = vld [vmem:[%s3 + $0xc] sm:$0xf]
    %v348 = vunpack.c.l.b16 %v340
    %v349 = vunpack.c.l.b16 %v341
    %v350 = vunpack.c.l.b16 %v342
    %v351 = vunpack.c.l.b16 %v343
    %v352 = vpack.c.b16 %v349, %v348
    %v353 = vpack.c.b16 %v351, %v350
    %vm356 = vcmask 261120
    %v358 = vsel %vm356, 0, 0
    %360 = vmatprep.subr.bf16.mxu0 0
    %361 = vmatpush1.bf16.msra.mxu0 0
    %362 = vmatprep.subr.bf16.mxu0 0
    %363 = vmatpush1.bf16.msra.mxu0 0
    %364 = vmatprep.subr.bf16.mxu0 0
    %365 = vmatpush1.bf16.msra.mxu0 0
    %366 = vmatprep.subr.bf16.mxu0 0
    %367 = vmatpush1.bf16.msra.mxu0 0
    %368 = vmatprep.subr.bf16.mxu0 0
    %369 = vmatpush1.bf16.msra.mxu0 0
    %370 = vmatprep.subr.bf16.mxu0 0
    %371 = vmatpush1.bf16.msra.mxu0 0
    %372 = vmatprep.subr.bf16.mxu0 0
    %373 = vmatpush1.bf16.msra.mxu0 %v353
    %374 = vmatprep.subr.bf16.mxu0 0
    %375 = vmatpush1.bf16.msra.mxu0 %v352
    %376 = vmatprep.subr.bf16.mxu0 0
    %377 = vmatpush2.bf16.msra.mxu0 0
    %378 = vmatprep.subr.bf16.mxu0 0
    %379 = vmatpush2.bf16.msra.mxu0 0
    %380 = vmatprep.subr.bf16.mxu0 0
    %381 = vmatpush2.bf16.msra.mxu0 0
    %382 = vmatprep.subr.bf16.mxu0 0
    %383 = vmatpush2.bf16.msra.mxu0 0
    %384 = vmatprep.subr.bf16.mxu0 0
    %385 = vmatpush2.bf16.msra.mxu0 0
    %386 = vmatprep.subr.bf16.mxu0 0
    %387 = vmatpush2.bf16.msra.mxu0 0
    %388 = vmatprep.subr.bf16.mxu0 0
    %389 = vmatpush2.bf16.msra.mxu0 0
    %390 = vmatprep.subr.bf16.mxu0 0
    %391 = vmatpush2.bf16.msra.mxu0 0
    %392 = vmatprep.mubr.bf16.mxu0 0
    %393 = vmatmul.mubr.bf16.gmra.mxu0 %v358
    %v394 = vpop.f32.mrf.mxu0
    %v395 = vadd.f32 0.0, %v394
    %v396 = vpop.f32.mrf.mxu0
    %v397 = vpop.f32.mrf.mxu0
    %v398 = vpop.f32.mrf.mxu0
    %399 = vdwg.mxu0
    %v400 = vadd.f32 %v310, %v395
    %v401 = vxor.u32 %v400, 2147483648
    %v402 = vmul.f32 %v401, 1.442695
    %v403 = vpow.pop %v402
    %v404 = vadd.f32 %v403, 1.0
    %v405 = vrcp.pop %v404
    %v406 = vmul.f32 1.0, %v405
    %v407 = vtanh.pop %v400
    %v408 = vmul.f32 %v406, 0.0
    %410 = vrot.lane.b32.xlu0 %v407, 64
    %v411 = vpop.permute.xlu0 %410
    %v413 = vmul.f32 %v406, %v411
    %415 = vrot.lane.b32.xlu0 %v413, 32
    %v416 = vpop.permute.xlu0 %415
    %v418 = vadd.f32 %v408, %v416
    %v419 = vtanh.pop %v418
    %421 = vrot.lane.b32.xlu0 %v419, 64
    %v422 = vpop.permute.xlu0 %421
    %v424 = vmul.f32 %v406, %v422
    %v425 = vpack.c.bf16 %v424, %v424
    %427 = vrot.lane.b32.xlu0 %v425, 32
    %v428 = vpop.permute.xlu0 %427
    %v430 = vsel %vm356, %v428, 0
    %432 = vmatprep.subr.bf16.mxu0 0
    %433 = vmatpush1.bf16.msra.mxu0 0
    %434 = vmatprep.subr.bf16.mxu0 0
    %435 = vmatpush1.bf16.msra.mxu0 0
    %436 = vmatprep.subr.bf16.mxu0 0
    %437 = vmatpush1.bf16.msra.mxu0 0
    %438 = vmatprep.subr.bf16.mxu0 0
    %439 = vmatpush1.bf16.msra.mxu0 0
    %440 = vmatprep.subr.bf16.mxu0 0
    %441 = vmatpush1.bf16.msra.mxu0 0
    %442 = vmatprep.subr.bf16.mxu0 0
    %443 = vmatpush1.bf16.msra.mxu0 0
    %444 = vmatprep.subr.bf16.mxu0 0
    %445 = vmatpush1.bf16.msra.mxu0 %v353
    %446 = vmatprep.subr.bf16.mxu0 0
    %447 = vmatpush1.bf16.msra.mxu0 %v352
    %448 = vmatprep.subr.bf16.mxu0 0
    %449 = vmatpush2.bf16.msra.mxu0 0
    %450 = vmatprep.subr.bf16.mxu0 0
    %451 = vmatpush2.bf16.msra.mxu0 0
    %452 = vmatprep.subr.bf16.mxu0 0
    %453 = vmatpush2.bf16.msra.mxu0 0
    %454 = vmatprep.subr.bf16.mxu0 0
    %455 = vmatpush2.bf16.msra.mxu0 0
    %456 = vmatprep.subr.bf16.mxu0 0
    %457 = vmatpush2.bf16.msra.mxu0 0
    %458 = vmatprep.subr.bf16.mxu0 0
    %459 = vmatpush2.bf16.msra.mxu0 0
    %460 = vmatprep.subr.bf16.mxu0 0
    %461 = vmatpush2.bf16.msra.mxu0 0
    %462 = vmatprep.subr.bf16.mxu0 0
    %463 = vmatpush2.bf16.msra.mxu0 0
    %464 = vmatprep.mubr.bf16.mxu0 0
    %465 = vmatmul.mubr.bf16.gmra.mxu0 %v430
    %v466 = vpop.f32.mrf.mxu0
    %v467 = vadd.f32 0.0, %v466
    %v468 = vpop.f32.mrf.mxu0
    %v469 = vpop.f32.mrf.mxu0
    %v470 = vpop.f32.mrf.mxu0
    %471 = vdwg.mxu0
    %v472 = vadd.f32 %v313, %v467
    %v473 = vxor.u32 %v472, 2147483648
    %v474 = vmul.f32 %v473, 1.442695
    %v475 = vpow.pop %v474
    %v476 = vadd.f32 %v475, 1.0
    %v477 = vrcp.pop %v476
    %v478 = vmul.f32 1.0, %v477
    %v479 = vtanh.pop %v472
    %v480 = vmul.f32 %v478, %v418
    %482 = vrot.lane.b32.xlu0 %v479, 64
    %v483 = vpop.permute.xlu0 %482
    %v485 = vmul.f32 %v478, %v483
    %487 = vrot.lane.b32.xlu0 %v485, 32
    %v488 = vpop.permute.xlu0 %487
    %v490 = vadd.f32 %v480, %v488
    %v491 = vtanh.pop %v490
    %493 = vrot.lane.b32.xlu0 %v491, 64
    %v494 = vpop.permute.xlu0 %493
    %v496 = vmul.f32 %v478, %v494
    %v497 = vpack.c.bf16 %v496, %v496
    %499 = vrot.lane.b32.xlu0 %v497, 32
    %v500 = vpop.permute.xlu0 %499
    %v502 = vsel %vm356, %v500, 0
    %504 = vmatprep.subr.bf16.mxu0 0
    %505 = vmatpush1.bf16.msra.mxu0 0
    %506 = vmatprep.subr.bf16.mxu0 0
    %507 = vmatpush1.bf16.msra.mxu0 0
    %508 = vmatprep.subr.bf16.mxu0 0
    %509 = vmatpush1.bf16.msra.mxu0 0
    %510 = vmatprep.subr.bf16.mxu0 0
    %511 = vmatpush1.bf16.msra.mxu0 0
    %512 = vmatprep.subr.bf16.mxu0 0
    %513 = vmatpush1.bf16.msra.mxu0 0
    %514 = vmatprep.subr.bf16.mxu0 0
    %515 = vmatpush1.bf16.msra.mxu0 0
    %516 = vmatprep.subr.bf16.mxu0 0
    %517 = vmatpush1.bf16.msra.mxu0 %v353
    %518 = vmatprep.subr.bf16.mxu0 0
    %519 = vmatpush1.bf16.msra.mxu0 %v352
    %520 = vmatprep.subr.bf16.mxu0 0
    %521 = vmatpush2.bf16.msra.mxu0 0
    %522 = vmatprep.subr.bf16.mxu0 0
    %523 = vmatpush2.bf16.msra.mxu0 0
    %524 = vmatprep.subr.bf16.mxu0 0
    %525 = vmatpush2.bf16.msra.mxu0 0
    %526 = vmatprep.subr.bf16.mxu0 0
    %527 = vmatpush2.bf16.msra.mxu0 0
    %528 = vmatprep.subr.bf16.mxu0 0
    %529 = vmatpush2.bf16.msra.mxu0 0
    %530 = vmatprep.subr.bf16.mxu0 0
    %531 = vmatpush2.bf16.msra.mxu0 0
    %532 = vmatprep.subr.bf16.mxu0 0
    %533 = vmatpush2.bf16.msra.mxu0 0
    %534 = vmatprep.subr.bf16.mxu0 0
    %535 = vmatpush2.bf16.msra.mxu0 0
    %536 = vmatprep.mubr.bf16.mxu0 0
    %537 = vmatmul.mubr.bf16.gmra.mxu0 %v502
    %v538 = vpop.f32.mrf.mxu0
    %v539 = vadd.f32 0.0, %v538
    %v540 = vpop.f32.mrf.mxu0
    %v541 = vpop.f32.mrf.mxu0
    %v542 = vpop.f32.mrf.mxu0
    %543 = vdwg.mxu0
    %v544 = vadd.f32 %v318, %v539
    %v545 = vxor.u32 %v544, 2147483648
    %v546 = vmul.f32 %v545, 1.442695
    %v547 = vpow.pop %v546
    %v548 = vadd.f32 %v547, 1.0
    %v549 = vrcp.pop %v548
    %v550 = vmul.f32 1.0, %v549
    %v551 = vtanh.pop %v544
    %v552 = vmul.f32 %v550, %v490
    %554 = vrot.lane.b32.xlu0 %v551, 64
    %v555 = vpop.permute.xlu0 %554
    %v557 = vmul.f32 %v550, %v555
    %559 = vrot.lane.b32.xlu0 %v557, 32
    %v560 = vpop.permute.xlu0 %559
    %v562 = vadd.f32 %v552, %v560
    %v563 = vtanh.pop %v562
    %565 = vrot.lane.b32.xlu0 %v563, 64
    %v566 = vpop.permute.xlu0 %565
    %v568 = vmul.f32 %v550, %v566
    %v569 = vpack.c.bf16 %v568, %v568
    %571 = vrot.lane.b32.xlu0 %v569, 32
    %v572 = vpop.permute.xlu0 %571
    %v574 = vsel %vm356, %v572, 0
    %576 = vmatprep.subr.bf16.mxu0 0
    %577 = vmatpush1.bf16.msra.mxu0 0
    %578 = vmatprep.subr.bf16.mxu0 0
    %579 = vmatpush1.bf16.msra.mxu0 0
    %580 = vmatprep.subr.bf16.mxu0 0
    %581 = vmatpush1.bf16.msra.mxu0 0
    %582 = vmatprep.subr.bf16.mxu0 0
    %583 = vmatpush1.bf16.msra.mxu0 0
    %584 = vmatprep.subr.bf16.mxu0 0
    %585 = vmatpush1.bf16.msra.mxu0 0
    %586 = vmatprep.subr.bf16.mxu0 0
    %587 = vmatpush1.bf16.msra.mxu0 0
    %588 = vmatprep.subr.bf16.mxu0 0
    %589 = vmatpush1.bf16.msra.mxu0 %v353
    %590 = vmatprep.subr.bf16.mxu0 0
    %591 = vmatpush1.bf16.msra.mxu0 %v352
    %592 = vmatprep.subr.bf16.mxu0 0
    %593 = vmatpush2.bf16.msra.mxu0 0
    %594 = vmatprep.subr.bf16.mxu0 0
    %595 = vmatpush2.bf16.msra.mxu0 0
    %596 = vmatprep.subr.bf16.mxu0 0
    %597 = vmatpush2.bf16.msra.mxu0 0
    %598 = vmatprep.subr.bf16.mxu0 0
    %599 = vmatpush2.bf16.msra.mxu0 0
    %600 = vmatprep.subr.bf16.mxu0 0
    %601 = vmatpush2.bf16.msra.mxu0 0
    %602 = vmatprep.subr.bf16.mxu0 0
    %603 = vmatpush2.bf16.msra.mxu0 0
    %604 = vmatprep.subr.bf16.mxu0 0
    %605 = vmatpush2.bf16.msra.mxu0 0
    %606 = vmatprep.subr.bf16.mxu0 0
    %607 = vmatpush2.bf16.msra.mxu0 0
    %608 = vmatprep.mubr.bf16.mxu0 0
    %609 = vmatmul.mubr.bf16.gmra.mxu0 %v574
    %v610 = vpop.f32.mrf.mxu0
    %v611 = vadd.f32 0.0, %v610
    %v612 = vpop.f32.mrf.mxu0
    %v613 = vpop.f32.mrf.mxu0
    %v614 = vpop.f32.mrf.mxu0
    %615 = vdwg.mxu0
    %v616 = vadd.f32 %v321, %v611
    %v617 = vxor.u32 %v616, 2147483648
    %v618 = vmul.f32 %v617, 1.442695
    %v619 = vpow.pop %v618
    %v620 = vadd.f32 %v619, 1.0
    %v621 = vrcp.pop %v620
    %v622 = vmul.f32 1.0, %v621
    %v623 = vtanh.pop %v616
    %v624 = vmul.f32 %v622, %v562
    %626 = vrot.lane.b32.xlu0 %v623, 64
    %v627 = vpop.permute.xlu0 %626
    %v629 = vmul.f32 %v622, %v627
    %631 = vrot.lane.b32.xlu0 %v629, 32
    %v632 = vpop.permute.xlu0 %631
    %v634 = vadd.f32 %v624, %v632
    %v635 = vtanh.pop %v634
    %637 = vrot.lane.b32.xlu0 %v635, 64
    %v638 = vpop.permute.xlu0 %637
    %v640 = vmul.f32 %v622, %v638
    %v641 = vpack.c.bf16 %v640, %v640
    %643 = vrot.lane.b32.xlu0 %v641, 32
    %v644 = vpop.permute.xlu0 %643
    %v646 = vsel %vm356, %v644, 0
    %648 = vmatprep.subr.bf16.mxu0 0
    %649 = vmatpush1.bf16.msra.mxu0 0
    %650 = vmatprep.subr.bf16.mxu0 0
    %651 = vmatpush1.bf16.msra.mxu0 0
    %652 = vmatprep.subr.bf16.mxu0 0
    %653 = vmatpush1.bf16.msra.mxu0 0
    %654 = vmatprep.subr.bf16.mxu0 0
    %655 = vmatpush1.bf16.msra.mxu0 0
    %656 = vmatprep.subr.bf16.mxu0 0
    %657 = vmatpush1.bf16.msra.mxu0 0
    %658 = vmatprep.subr.bf16.mxu0 0
    %659 = vmatpush1.bf16.msra.mxu0 0
    %660 = vmatprep.subr.bf16.mxu0 0
    %661 = vmatpush1.bf16.msra.mxu0 %v353
    %662 = vmatprep.subr.bf16.mxu0 0
    %663 = vmatpush1.bf16.msra.mxu0 %v352
    %664 = vmatprep.subr.bf16.mxu0 0
    %665 = vmatpush2.bf16.msra.mxu0 0
    %666 = vmatprep.subr.bf16.mxu0 0
    %667 = vmatpush2.bf16.msra.mxu0 0
    %668 = vmatprep.subr.bf16.mxu0 0
    %669 = vmatpush2.bf16.msra.mxu0 0
    %670 = vmatprep.subr.bf16.mxu0 0
    %671 = vmatpush2.bf16.msra.mxu0 0
    %672 = vmatprep.subr.bf16.mxu0 0
    %673 = vmatpush2.bf16.msra.mxu0 0
    %674 = vmatprep.subr.bf16.mxu0 0
    %675 = vmatpush2.bf16.msra.mxu0 0
    %676 = vmatprep.subr.bf16.mxu0 0
    %677 = vmatpush2.bf16.msra.mxu0 0
    %678 = vmatprep.subr.bf16.mxu0 0
    %679 = vmatpush2.bf16.msra.mxu0 0
    %680 = vmatprep.mubr.bf16.mxu0 0
    %681 = vmatmul.mubr.bf16.gmra.mxu0 %v646
    %v682 = vpop.f32.mrf.mxu0
    %v683 = vadd.f32 0.0, %v682
    %v684 = vpop.f32.mrf.mxu0
    %v685 = vpop.f32.mrf.mxu0
    %v686 = vpop.f32.mrf.mxu0
    %687 = vdwg.mxu0
    %v688 = vadd.f32 %v326, %v683
    %v689 = vxor.u32 %v688, 2147483648
    %v690 = vmul.f32 %v689, 1.442695
    %v691 = vpow.pop %v690
    %v692 = vadd.f32 %v691, 1.0
    %v693 = vrcp.pop %v692
    %v694 = vmul.f32 1.0, %v693
    %v695 = vtanh.pop %v688
    %v696 = vmul.f32 %v694, %v634
    %698 = vrot.lane.b32.xlu0 %v695, 64
    %v699 = vpop.permute.xlu0 %698
    %v701 = vmul.f32 %v694, %v699
    %703 = vrot.lane.b32.xlu0 %v701, 32
    %v704 = vpop.permute.xlu0 %703
    %v706 = vadd.f32 %v696, %v704
    %v707 = vtanh.pop %v706
    %709 = vrot.lane.b32.xlu0 %v707, 64
    %v710 = vpop.permute.xlu0 %709
    %v712 = vmul.f32 %v694, %v710
    %v713 = vpack.c.bf16 %v712, %v712
    %715 = vrot.lane.b32.xlu0 %v713, 32
    %v716 = vpop.permute.xlu0 %715
    %v718 = vsel %vm356, %v716, 0
    %720 = vmatprep.subr.bf16.mxu0 0
    %721 = vmatpush1.bf16.msra.mxu0 0
    %722 = vmatprep.subr.bf16.mxu0 0
    %723 = vmatpush1.bf16.msra.mxu0 0
    %724 = vmatprep.subr.bf16.mxu0 0
    %725 = vmatpush1.bf16.msra.mxu0 0
    %726 = vmatprep.subr.bf16.mxu0 0
    %727 = vmatpush1.bf16.msra.mxu0 0
    %728 = vmatprep.subr.bf16.mxu0 0
    %729 = vmatpush1.bf16.msra.mxu0 0
    %730 = vmatprep.subr.bf16.mxu0 0
    %731 = vmatpush1.bf16.msra.mxu0 0
    %732 = vmatprep.subr.bf16.mxu0 0
    %733 = vmatpush1.bf16.msra.mxu0 %v353
    %734 = vmatprep.subr.bf16.mxu0 0
    %735 = vmatpush1.bf16.msra.mxu0 %v352
    %736 = vmatprep.subr.bf16.mxu0 0
    %737 = vmatpush2.bf16.msra.mxu0 0
    %738 = vmatprep.subr.bf16.mxu0 0
    %739 = vmatpush2.bf16.msra.mxu0 0
    %740 = vmatprep.subr.bf16.mxu0 0
    %741 = vmatpush2.bf16.msra.mxu0 0
    %742 = vmatprep.subr.bf16.mxu0 0
    %743 = vmatpush2.bf16.msra.mxu0 0
    %744 = vmatprep.subr.bf16.mxu0 0
    %745 = vmatpush2.bf16.msra.mxu0 0
    %746 = vmatprep.subr.bf16.mxu0 0
    %747 = vmatpush2.bf16.msra.mxu0 0
    %748 = vmatprep.subr.bf16.mxu0 0
    %749 = vmatpush2.bf16.msra.mxu0 0
    %750 = vmatprep.subr.bf16.mxu0 0
    %751 = vmatpush2.bf16.msra.mxu0 0
    %752 = vmatprep.mubr.bf16.mxu0 0
    %753 = vmatmul.mubr.bf16.gmra.mxu0 %v718
    %v754 = vpop.f32.mrf.mxu0
    %v755 = vadd.f32 0.0, %v754
    %v756 = vpop.f32.mrf.mxu0
    %v757 = vpop.f32.mrf.mxu0
    %v758 = vpop.f32.mrf.mxu0
    %759 = vdwg.mxu0
    %v760 = vadd.f32 %v329, %v755
    %v761 = vxor.u32 %v760, 2147483648
    %v762 = vmul.f32 %v761, 1.442695
    %v763 = vpow.pop %v762
    %v764 = vadd.f32 %v763, 1.0
    %v765 = vrcp.pop %v764
    %v766 = vmul.f32 1.0, %v765
    %v767 = vtanh.pop %v760
    %v768 = vmul.f32 %v766, %v706
    %770 = vrot.lane.b32.xlu0 %v767, 64
    %v771 = vpop.permute.xlu0 %770
    %v773 = vmul.f32 %v766, %v771
    %775 = vrot.lane.b32.xlu0 %v773, 32
    %v776 = vpop.permute.xlu0 %775
    %v778 = vadd.f32 %v768, %v776
    %v779 = vtanh.pop %v778
    %781 = vrot.lane.b32.xlu0 %v779, 64
    %v782 = vpop.permute.xlu0 %781
    %v784 = vmul.f32 %v766, %v782
    %v785 = vpack.c.bf16 %v784, %v784
    %787 = vrot.lane.b32.xlu0 %v785, 32
    %v788 = vpop.permute.xlu0 %787
    %v790 = vsel %vm356, %v788, 0
    %792 = vmatprep.subr.bf16.mxu0 0
    %793 = vmatpush1.bf16.msra.mxu0 0
    %794 = vmatprep.subr.bf16.mxu0 0
    %795 = vmatpush1.bf16.msra.mxu0 0
    %796 = vmatprep.subr.bf16.mxu0 0
    %797 = vmatpush1.bf16.msra.mxu0 0
    %798 = vmatprep.subr.bf16.mxu0 0
    %799 = vmatpush1.bf16.msra.mxu0 0
    %800 = vmatprep.subr.bf16.mxu0 0
    %801 = vmatpush1.bf16.msra.mxu0 0
    %802 = vmatprep.subr.bf16.mxu0 0
    %803 = vmatpush1.bf16.msra.mxu0 0
    %804 = vmatprep.subr.bf16.mxu0 0
    %805 = vmatpush1.bf16.msra.mxu0 %v353
    %806 = vmatprep.subr.bf16.mxu0 0
    %807 = vmatpush1.bf16.msra.mxu0 %v352
    %808 = vmatprep.subr.bf16.mxu0 0
    %809 = vmatpush2.bf16.msra.mxu0 0
    %810 = vmatprep.subr.bf16.mxu0 0
    %811 = vmatpush2.bf16.msra.mxu0 0
    %812 = vmatprep.subr.bf16.mxu0 0
    %813 = vmatpush2.bf16.msra.mxu0 0
    %814 = vmatprep.subr.bf16.mxu0 0
    %815 = vmatpush2.bf16.msra.mxu0 0
    %816 = vmatprep.subr.bf16.mxu0 0
    %817 = vmatpush2.bf16.msra.mxu0 0
    %818 = vmatprep.subr.bf16.mxu0 0
    %819 = vmatpush2.bf16.msra.mxu0 0
    %820 = vmatprep.subr.bf16.mxu0 0
    %821 = vmatpush2.bf16.msra.mxu0 0
    %822 = vmatprep.subr.bf16.mxu0 0
    %823 = vmatpush2.bf16.msra.mxu0 0
    %824 = vmatprep.mubr.bf16.mxu0 0
    %825 = vmatmul.mubr.bf16.gmra.mxu0 %v790
    %v826 = vpop.f32.mrf.mxu0
    %v827 = vadd.f32 0.0, %v826
    %v828 = vpop.f32.mrf.mxu0
    %v829 = vpop.f32.mrf.mxu0
    %v830 = vpop.f32.mrf.mxu0
    %831 = vdwg.mxu0
    %v832 = vadd.f32 %v334, %v827
    %v833 = vxor.u32 %v832, 2147483648
    %v834 = vmul.f32 %v833, 1.442695
    %v835 = vpow.pop %v834
    %v836 = vadd.f32 %v835, 1.0
    %v837 = vrcp.pop %v836
    %v838 = vmul.f32 1.0, %v837
    %v839 = vtanh.pop %v832
    %v840 = vmul.f32 %v838, %v778
    %842 = vrot.lane.b32.xlu0 %v839, 64
    %v843 = vpop.permute.xlu0 %842
    %v845 = vmul.f32 %v838, %v843
    %847 = vrot.lane.b32.xlu0 %v845, 32
    %v848 = vpop.permute.xlu0 %847
    %v850 = vadd.f32 %v840, %v848
    %v851 = vtanh.pop %v850
    %853 = vrot.lane.b32.xlu0 %v851, 64
    %v854 = vpop.permute.xlu0 %853
    %v856 = vmul.f32 %v838, %v854
    %v857 = vpack.c.bf16 %v856, %v856
    %859 = vrot.lane.b32.xlu0 %v857, 32
    %v860 = vpop.permute.xlu0 %859
    %v862 = vsel %vm356, %v860, 0
    %864 = vmatprep.subr.bf16.mxu0 0
    %865 = vmatpush1.bf16.msra.mxu0 0
    %866 = vmatprep.subr.bf16.mxu0 0
    %867 = vmatpush1.bf16.msra.mxu0 0
    %868 = vmatprep.subr.bf16.mxu0 0
    %869 = vmatpush1.bf16.msra.mxu0 0
    %870 = vmatprep.subr.bf16.mxu0 0
    %871 = vmatpush1.bf16.msra.mxu0 0
    %872 = vmatprep.subr.bf16.mxu0 0
    %873 = vmatpush1.bf16.msra.mxu0 0
    %874 = vmatprep.subr.bf16.mxu0 0
    %875 = vmatpush1.bf16.msra.mxu0 0
    %876 = vmatprep.subr.bf16.mxu0 0
    %877 = vmatpush1.bf16.msra.mxu0 %v353
    %878 = vmatprep.subr.bf16.mxu0 0
    %879 = vmatpush1.bf16.msra.mxu0 %v352
    %880 = vmatprep.subr.bf16.mxu0 0
    %881 = vmatpush2.bf16.msra.mxu0 0
    %882 = vmatprep.subr.bf16.mxu0 0
    %883 = vmatpush2.bf16.msra.mxu0 0
    %884 = vmatprep.subr.bf16.mxu0 0
    %885 = vmatpush2.bf16.msra.mxu0 0
    %886 = vmatprep.subr.bf16.mxu0 0
    %887 = vmatpush2.bf16.msra.mxu0 0
    %888 = vmatprep.subr.bf16.mxu0 0
    %889 = vmatpush2.bf16.msra.mxu0 0
    %890 = vmatprep.subr.bf16.mxu0 0
    %891 = vmatpush2.bf16.msra.mxu0 0
    %892 = vmatprep.subr.bf16.mxu0 0
    %893 = vmatpush2.bf16.msra.mxu0 0
    %894 = vmatprep.subr.bf16.mxu0 0
    %895 = vmatpush2.bf16.msra.mxu0 0
    %896 = vmatprep.mubr.bf16.mxu0 0
    %897 = vmatmul.mubr.bf16.gmra.mxu0 %v862
    %v898 = vpop.f32.mrf.mxu0
    %v899 = vadd.f32 0.0, %v898
    %v900 = vpop.f32.mrf.mxu0
    %v901 = vpop.f32.mrf.mxu0
    %v902 = vpop.f32.mrf.mxu0
    %903 = vdwg.mxu0
    %v904 = vadd.f32 %v337, %v899
    %v905 = vxor.u32 %v904, 2147483648
    %v906 = vmul.f32 %v905, 1.442695
    %v907 = vpow.pop %v906
    %v908 = vadd.f32 %v907, 1.0
    %v909 = vrcp.pop %v908
    %v910 = vmul.f32 1.0, %v909
    %v911 = vtanh.pop %v904
    %v912 = vmul.f32 %v910, %v850
    %914 = vrot.lane.b32.xlu0 %v911, 64
    %v915 = vpop.permute.xlu0 %914
    %v917 = vmul.f32 %v910, %v915
    %919 = vrot.lane.b32.xlu0 %v917, 32
    %v920 = vpop.permute.xlu0 %919
    %v922 = vadd.f32 %v912, %v920
    %v923 = vtanh.pop %v922
    %925 = vrot.lane.b32.xlu0 %v923, 64
    %v926 = vpop.permute.xlu0 %925
    %v928 = vmul.f32 %v910, %v926
    %v929 = vpack.c.bf16 %v496, %v424
    %v930 = vpack.c.bf16 %v640, %v568
    %v931 = vpack.c.bf16 %v784, %v712
    %v932 = vpack.c.bf16 %v928, %v856
    %v933 = vld [vmem:[%s5] sm:$0xf]
    %v934 = vld [vmem:[%s5 + $0x4] sm:$0xf]
    %v935 = vld [vmem:[%s5 + $0x8] sm:$0xf]
    %v936 = vld [vmem:[%s5 + $0xc] sm:$0xf]
    %v937 = vld [vmem:[%s6] sm:$0x1]
    %v939 = vlaneseq
    %v940 = vshrl.u32 %v939, 7
    %v941 = vsub.s32 0, %v940
    %v942 = vrot.slane %v937, %v941
    %948 = vrot.lane.b32.xlu0 %v929, 32
    %v949 = vpop.permute.xlu0 %948
    %950 = vrot.lane.b32.xlu0 %v930, 32
    %v951 = vpop.permute.xlu0 %950
    %952 = vrot.lane.b32.xlu0 %v931, 32
    %v953 = vpop.permute.xlu0 %952
    %954 = vrot.lane.b32.xlu0 %v932, 32
    %v955 = vpop.permute.xlu0 %954
    %v960 = vunpack.c.l.b16 %v933
    %v961 = vunpack.c.l.b16 %v934
    %v962 = vunpack.c.l.b16 %v935
    %v963 = vunpack.c.l.b16 %v936
    %v964 = vpack.c.b16 %v961, %v960
    %v965 = vpack.c.b16 %v963, %v962
    %v969 = vsel %vm356, %v949, 0
    %v972 = vsel %vm356, %v951, 0
    %v975 = vsel %vm356, %v953, 0
    %v978 = vsel %vm356, %v955, 0
    %980 = vmatprep.subr.bf16.mxu0 0
    %981 = vmatpush1.bf16.msra.mxu0 0
    %982 = vmatprep.subr.bf16.mxu0 0
    %983 = vmatpush1.bf16.msra.mxu0 0
    %984 = vmatprep.subr.bf16.mxu0 0
    %985 = vmatpush1.bf16.msra.mxu0 0
    %986 = vmatprep.subr.bf16.mxu0 0
    %987 = vmatpush1.bf16.msra.mxu0 0
    %988 = vmatprep.subr.bf16.mxu0 0
    %989 = vmatpush1.bf16.msra.mxu0 0
    %990 = vmatprep.subr.bf16.mxu0 0
    %991 = vmatpush1.bf16.msra.mxu0 0
    %992 = vmatprep.subr.bf16.mxu0 0
    %993 = vmatpush1.bf16.msra.mxu0 %v965
    %994 = vmatprep.subr.bf16.mxu0 0
    %995 = vmatpush1.bf16.msra.mxu0 %v964
    %996 = vmatprep.subr.bf16.mxu0 0
    %997 = vmatpush2.bf16.msra.mxu0 0
    %998 = vmatprep.subr.bf16.mxu0 0
    %999 = vmatpush2.bf16.msra.mxu0 0
    %1000 = vmatprep.subr.bf16.mxu0 0
    %1001 = vmatpush2.bf16.msra.mxu0 0
    %1002 = vmatprep.subr.bf16.mxu0 0
    %1003 = vmatpush2.bf16.msra.mxu0 0
    %1004 = vmatprep.subr.bf16.mxu0 0
    %1005 = vmatpush2.bf16.msra.mxu0 0
    %1006 = vmatprep.subr.bf16.mxu0 0
    %1007 = vmatpush2.bf16.msra.mxu0 0
    %1008 = vmatprep.subr.bf16.mxu0 0
    %1009 = vmatpush2.bf16.msra.mxu0 0
    %1010 = vmatprep.subr.bf16.mxu0 0
    %1011 = vmatpush2.bf16.msra.mxu0 0
    %1012 = vmatprep.mubr.bf16.mxu0 0
    %1013 = vmatmul.mubr.bf16.gmra.mxu0 %v969
    %v1014 = vpop.f32.mrf.mxu0
    %v1015 = vadd.f32 %v942, %v1014
    %v1016 = vpop.f32.mrf.mxu0
    %v1017 = vpop.f32.mrf.mxu0
    %v1018 = vadd.f32 %v942, %v1017
    %v1019 = vpop.f32.mrf.mxu0
    %1020 = vmatprep.mubr.bf16.mxu0 0
    %1021 = vmatmul.mubr.bf16.gmra.mxu0 %v972
    %v1022 = vpop.f32.mrf.mxu0
    %v1023 = vadd.f32 %v942, %v1022
    %v1024 = vpop.f32.mrf.mxu0
    %v1025 = vpop.f32.mrf.mxu0
    %v1026 = vadd.f32 %v942, %v1025
    %v1027 = vpop.f32.mrf.mxu0
    %1028 = vmatprep.mubr.bf16.mxu0 0
    %1029 = vmatmul.mubr.bf16.gmra.mxu0 %v975
    %v1030 = vpop.f32.mrf.mxu0
    %v1031 = vadd.f32 %v942, %v1030
    %v1032 = vpop.f32.mrf.mxu0
    %v1033 = vpop.f32.mrf.mxu0
    %v1034 = vadd.f32 %v942, %v1033
    %v1035 = vpop.f32.mrf.mxu0
    %1036 = vmatprep.mubr.bf16.mxu0 0
    %1037 = vmatmul.mubr.bf16.gmra.mxu0 %v978
    %v1038 = vpop.f32.mrf.mxu0
    %v1039 = vadd.f32 %v942, %v1038
    %v1040 = vpop.f32.mrf.mxu0
    %v1041 = vpop.f32.mrf.mxu0
    %v1042 = vadd.f32 %v942, %v1041
    %v1043 = vpop.f32.mrf.mxu0
    %1044 = vdwg.mxu0
    %v1045 = vxor.u32 %v1015, 2147483648
    %v1046 = vxor.u32 %v1018, 2147483648
    %v1047 = vxor.u32 %v1023, 2147483648
    %v1048 = vxor.u32 %v1026, 2147483648
    %v1049 = vxor.u32 %v1031, 2147483648
    %v1050 = vxor.u32 %v1034, 2147483648
    %v1051 = vxor.u32 %v1039, 2147483648
    %v1052 = vxor.u32 %v1042, 2147483648
    %v1053 = vmul.f32 %v1045, 1.442695
    %v1054 = vpow.pop %v1053
    %v1055 = vmul.f32 %v1046, 1.442695
    %v1056 = vpow.pop %v1055
    %v1057 = vmul.f32 %v1047, 1.442695
    %v1058 = vpow.pop %v1057
    %v1059 = vmul.f32 %v1048, 1.442695
    %v1060 = vpow.pop %v1059
    %v1061 = vmul.f32 %v1049, 1.442695
    %v1062 = vpow.pop %v1061
    %v1063 = vmul.f32 %v1050, 1.442695
    %v1064 = vpow.pop %v1063
    %v1065 = vmul.f32 %v1051, 1.442695
    %v1066 = vpow.pop %v1065
    %v1067 = vmul.f32 %v1052, 1.442695
    %v1068 = vpow.pop %v1067
    %v1069 = vadd.f32 %v1054, 1.0
    %v1070 = vadd.f32 %v1056, 1.0
    %v1071 = vadd.f32 %v1058, 1.0
    %v1072 = vadd.f32 %v1060, 1.0
    %v1073 = vadd.f32 %v1062, 1.0
    %v1074 = vadd.f32 %v1064, 1.0
    %v1075 = vadd.f32 %v1066, 1.0
    %v1076 = vadd.f32 %v1068, 1.0
    %v1077 = vrcp.pop %v1069
    %v1078 = vmul.f32 1.0, %v1077
    %v1079 = vrcp.pop %v1070
    %v1080 = vmul.f32 1.0, %v1079
    %v1081 = vrcp.pop %v1071
    %v1082 = vmul.f32 1.0, %v1081
    %v1083 = vrcp.pop %v1072
    %v1084 = vmul.f32 1.0, %v1083
    %v1085 = vrcp.pop %v1073
    %v1086 = vmul.f32 1.0, %v1085
    %v1087 = vrcp.pop %v1074
    %v1088 = vmul.f32 1.0, %v1087
    %v1089 = vrcp.pop %v1075
    %v1090 = vmul.f32 1.0, %v1089
    %v1091 = vrcp.pop %v1076
    %v1092 = vmul.f32 1.0, %v1091
    %1094 = vrot.lane.b32.xlu0 %v1080, 16
    %v1095 = vpop.permute.xlu0 %1094
    %1098 = vrot.lane.b32.xlu0 %v1082, 32
    %v1099 = vpop.permute.xlu0 %1098
    %1102 = vrot.lane.b32.xlu0 %v1084, 48
    %v1103 = vpop.permute.xlu0 %1102
    %1106 = vrot.lane.b32.xlu0 %v1086, 64
    %v1107 = vpop.permute.xlu0 %1106
    %1110 = vrot.lane.b32.xlu0 %v1088, 80
    %v1111 = vpop.permute.xlu0 %1110
    %1114 = vrot.lane.b32.xlu0 %v1090, 96
    %v1115 = vpop.permute.xlu0 %1114
    %1118 = vrot.lane.b32.xlu0 %v1092, 112
    %v1119 = vpop.permute.xlu0 %1118
    %vm1121 = vcmask 130048
    %v1122 = vsel %vm1121, %v1078, %v1095
    %v1123 = vsel %vm356, %v1122, %v1099
    %vm1124 = vcmask 392192
    %v1125 = vsel %vm1124, %v1123, %v1103
    %v1126 = vsel %vm262, %v1125, %v1107
    %vm1127 = vcmask 654336
    %v1128 = vsel %vm1127, %v1126, %v1111
    %vm1129 = vcmask 785408
    %v1130 = vsel %vm1129, %v1128, %v1115
    %vm1131 = vcmask 916480
    %v1132 = vsel %vm1131, %v1130, %v1119
    %1133 = vst [vmem:[#allocation2] sm:$0xff] %v1132
    // Predicated region
    $region30: #{tpu_custom_call.1} parent=1 // pred_check
      _
    $region31: #{tpu_custom_call.1} parent=1 // pred_check_branch
      %1135 = sbr.rel (0) target = $region33
    $region32: #{tpu_custom_call.1} parent=1 // pred_region
      %s1137 = ssub.s32 128, 128
      %1138 = vsyncadd [#allocation3], %s1137
      %s1140 = sshll.u32 [#allocation2], 4
      %s1141 = int_to_ptr.vmem [resolvable:$true] %s1140
      %1143 = dma.vmem_to_hbm [thread:$0]  %s1141, 128, %s7, [#allocation3]
    $region33: #{tpu_custom_call.1} parent=1 // pred_fallthru
      _
    // Predicated region
    $region34: #{tpu_custom_call.1} parent=1 // pred_check
      _
    $region35: #{tpu_custom_call.1} parent=1 // pred_check_branch
      %1145 = sbr.rel (0) target = $region37
    $region36: #{tpu_custom_call.1} parent=1 // pred_region
      %1146 = dma.done [#allocation3], 128
    $region37: #{tpu_custom_call.1} parent=1 // pred_fallthru
      _
    %1147 = vsyncpa [#allocation3], 1

</llo_original>
